<compile_context>
chip_gen: v5e
topology: v5e:2x2
jax: 0.10.0
libtpu: 0.0.40
codegen_flags: <defaults>
</compile_context>

<pallas_src>
import jax
import jax.numpy as jnp
from jax.experimental import pallas as pl
from jax.experimental.pallas import tpu as pltpu


_ROW_TILE = 2048         # max rows per grid step (multiple of 8, ~12 MiB VMEM)
_LEAKY_SLOPE = 0.01      # F.leaky_relu default slope


# ----------------------------- Pallas kernel -------------------------------

def _fused_forward_kernel(x_ref, c1_ref, cb1_ref, c2_ref, cb2_ref,
                          w1_ref, b1_ref, w2_ref, b2_ref, w3_ref, b3_ref,
                          o_ref):
    """One batch tile: conv1 -> conv2 -> fc1 -> fc2 -> fc3, all VMEM resident."""
    wd = c1_ref.dtype                       # MXU operand dtype (bf16 or f32)

    # conv1 lowered to dense (42 -> 128-padded) + leaky_relu
    h = jnp.dot(x_ref[...], c1_ref[...],
                preferred_element_type=jnp.float32) + cb1_ref[...]
    h = jnp.maximum(h, _LEAKY_SLOPE * h)

    # conv2 lowered to dense (128 -> 128-padded) + leaky_relu
    h = jnp.dot(h.astype(wd), c2_ref[...],
                preferred_element_type=jnp.float32) + cb2_ref[...]
    h = jnp.maximum(h, _LEAKY_SLOPE * h)

    # fc1 -> relu
    h = jnp.dot(h.astype(wd), w1_ref[...],
                preferred_element_type=jnp.float32) + b1_ref[...]
    h = jnp.maximum(h, 0.0)

    # fc2 -> relu
    h = jnp.dot(h.astype(wd), w2_ref[...],
                preferred_element_type=jnp.float32) + b2_ref[...]
    h = jnp.maximum(h, 0.0)

    # fc3 (output padded to 128 lanes; columns 7.. are exactly zero)
    y = jnp.dot(h.astype(wd), w3_ref[...],
                preferred_element_type=jnp.float32) + b3_ref[...]
    o_ref[...] = y.astype(o_ref.dtype)


# --------------------------- one-time param prep ----------------------------

def _conv_to_dense(w, in_shape):
    """Lower a VALID conv over a fixed input shape to a dense matrix.

    w: (Cout, Cin, kh, kw); in_shape: (Cin, H, W).
    Returns M with shape (Cin*H*W, Cout*Ho*Wo), NCHW-flatten ordering on both
    sides, i.e.  conv(x).reshape(B, -1) == x.reshape(B, -1) @ M.
    """
    cin, H, W = in_shape
    n_in = cin * H * W
    basis = jnp.eye(n_in, dtype=jnp.float32).reshape(n_in, cin, H, W)
    out = jax.lax.conv_general_dilated(
        basis, w.astype(jnp.float32), (1, 1), "VALID",
        dimension_numbers=("NCHW", "OIHW", "NCHW"))
    return out.reshape(n_in, -1)


def _pad_to(a, shape):
    return jnp.pad(a, [(0, t - s) for s, t in zip(a.shape, shape)])


def prepare_params(params, compute_dtype=jnp.bfloat16):
    """Lower torch-layout params to the fused-kernel layout (runs once).

    All narrow feature dims (84 / 42 / 7) are zero-padded to 128 lanes; the
    zero padding is numerically inert through every layer.
    """
    c1 = _pad_to(_conv_to_dense(params["conv1_w"], (1, 6, 7)), (42, 128))
    c2 = _pad_to(_conv_to_dense(params["conv2_w"], (7, 3, 4)), (128, 128))
    cb1 = _pad_to(jnp.repeat(params["conv1_b"], 3 * 4), (128,))   # bias per (C,H,W)
    cb2 = _pad_to(jnp.repeat(params["conv2_b"], 2 * 3), (128,))
    w1 = _pad_to(params["fc1_w"].T, (128, 256))
    w3 = _pad_to(params["fc3_w"].T, (256, 128))
    b3 = _pad_to(params["fc3_b"], (128,))
    f32 = jnp.float32
    return {
        "c1": c1.astype(compute_dtype),
        "cb1": cb1.reshape(1, -1).astype(f32),
        "c2": c2.astype(compute_dtype),
        "cb2": cb2.reshape(1, -1).astype(f32),
        "w1": w1.astype(compute_dtype),                      # (128, 256)
        "b1": params["fc1_b"].reshape(1, -1).astype(f32),
        "w2": params["fc2_w"].T.astype(compute_dtype),       # (256, 256)
        "b2": params["fc2_b"].reshape(1, -1).astype(f32),
        "w3": w3.astype(compute_dtype),                      # (256, 128)
        "b3": b3.reshape(1, -1).astype(f32),
    }


# ------------------------------- forward ------------------------------------

def _round_up(n, m):
    return (n + m - 1) // m * m


@jax.jit
def simple_cnn_forward(prepared, state):
    """state: (B, 42) float32 board  ->  actions: (B, 7) float32."""
    B = state.shape[0]
    wd = prepared["c1"].dtype
    # Cast once here (halves input DMA traffic for bf16; no per-tile VPU cast).
    x = state.reshape(B, -1).astype(wd)                       # (B, 42)

    # Tiny batches only: pad rows up to one 8-row sublane group (negligible).
    # Larger batches use a ragged last block instead of a full-batch jnp.pad;
    # rows are independent so discarded edge rows never contaminate valid ones.
    if B < 8:
        x = jnp.pad(x, ((0, 8 - B), (0, 0)))
    Bp = x.shape[0]

    # Row tile: multiple of 8, capped at _ROW_TILE, and >= 2 grid steps once
    # Bp > 8 so v7x's two TensorCores both get batch work ("parallel" axis).
    if Bp <= 8:
        tb = 8
    else:
        tb = min(_ROW_TILE, _round_up(pl.cdiv(Bp, 2), 8))
    grid = pl.cdiv(Bp, tb)

    weight_args = (prepared["c1"], prepared["cb1"],
                   prepared["c2"], prepared["cb2"],
                   prepared["w1"], prepared["b1"],
                   prepared["w2"], prepared["b2"],
                   prepared["w3"], prepared["b3"])
    full = lambda i: (0, 0)      # weights/biases: same (only) block every step

    out = pl.pallas_call(
        _fused_forward_kernel,
        out_shape=jax.ShapeDtypeStruct((Bp, 128), jnp.float32),
        grid=(grid,),
        in_specs=[pl.BlockSpec((tb, 42), lambda i: (i, 0))]
                 + [pl.BlockSpec(w.shape, full) for w in weight_args],
        out_specs=pl.BlockSpec((tb, 128), lambda i: (i, 0)),
        compiler_params=pltpu.CompilerParams(
            dimension_semantics=("parallel",),
            vmem_limit_bytes=32 << 20),
    )(x, *weight_args)
    return out[:B, :7]


# ----------------------- torch-layout init + reference ----------------------

def init_params(key):
    """Deterministic init matching torch layer shapes (uniform +-1/sqrt(fan_in))."""
    ks = jax.random.split(key, 10)

    def u(k, shape, fan_in):
        bound = 1.0 / jnp.sqrt(jnp.float32(fan_in))
        return jax.random.uniform(k, shape, jnp.float32, -bound, bound)

    return {
        "conv1_w": u(ks[0], (7, 1, 4, 4), 1 * 4 * 4),
        "conv1_b": u(ks[1], (7,), 1 * 4 * 4),
        "conv2_w": u(ks[2], (7, 7, 2, 2), 7 * 2 * 2),
        "conv2_b": u(ks[3], (7,), 7 * 2 * 2),
        "fc1_w": u(ks[4], (256, 42), 42),
        "fc1_b": u(ks[5], (256,), 42),
        "fc2_w": u(ks[6], (256, 256), 256),
        "fc2_b": u(ks[7], (256,), 256),
        "fc3_w": u(ks[8], (7, 256), 256),
        "fc3_b": u(ks[9], (7,), 256),
    }


def forward_reference(params, state):
    """Pure-JAX reference mirroring the torch forward, for correctness check."""
    x = state.reshape(-1, 1, 6, 7)
    dn = ("NCHW", "OIHW", "NCHW")
    y = jax.lax.conv_general_dilated(x, params["conv1_w"], (1, 1), "VALID",
                                     dimension_numbers=dn)
    y = y + params["conv1_b"][None, :, None, None]
    y = jnp.where(y > 0, y, _LEAKY_SLOPE * y)
    y = jax.lax.conv_general_dilated(y, params["conv2_w"], (1, 1), "VALID",
                                     dimension_numbers=dn)
    y = y + params["conv2_b"][None, :, None, None]
    y = jnp.where(y > 0, y, _LEAKY_SLOPE * y)
    y = y.reshape(state.shape[0], -1)
    y = jnp.maximum(y @ params["fc1_w"].T + params["fc1_b"], 0.0)
    y = jnp.maximum(y @ params["fc2_w"].T + params["fc2_b"], 0.0)
    return y @ params["fc3_w"].T + params["fc3_b"]


if __name__ == "__main__":
    key = jax.random.PRNGKey(0)
    pkey, xkey, xkey2 = jax.random.split(key, 3)
    params = init_params(pkey)

    # 1) float32 weights: bit-faithful path (tiny batch -> single padded tile).
    prep_f32 = prepare_params(params, compute_dtype=jnp.float32)
    B = 2
    state = jax.random.normal(xkey, (B, 42), dtype=jnp.float32)   # flat 6x7 board
    actions = jax.block_until_ready(simple_cnn_forward(prep_f32, state))
    ref = forward_reference(params, state)
    assert actions.shape == (B, 7), actions.shape
    assert jnp.allclose(actions, ref, atol=1e-4, rtol=1e-4), (
        f"f32 max abs err = {jnp.max(jnp.abs(actions - ref))}")

    # 2) default bfloat16 weights: exercises multi-tile grid + ragged last block.
    prep_bf16 = prepare_params(params)
    B2 = 35
    state2 = jax.random.normal(xkey2, (B2, 42), dtype=jnp.float32)
    actions2 = jax.block_until_ready(simple_cnn_forward(prep_bf16, state2))
    ref2 = forward_reference(params, state2)
    assert actions2.shape == (B2, 7), actions2.shape
    assert jnp.allclose(actions2, ref2, atol=5e-2, rtol=5e-2), (
        f"bf16 max abs err = {jnp.max(jnp.abs(actions2 - ref2))}")

    print("KERNEL_OK")
</pallas_src>

<mosaic_0001>
module attributes {stable_mosaic.version = 11 : i64} {
  func.func @_fused_forward_kernel(%arg0: i32, %arg1: memref<8x42xf32, #tpu.memory_space<vmem>>, %arg2: memref<42x128xf32, #tpu.memory_space<vmem>>, %arg3: memref<1x128xf32, #tpu.memory_space<vmem>>, %arg4: memref<128x128xf32, #tpu.memory_space<vmem>>, %arg5: memref<1x128xf32, #tpu.memory_space<vmem>>, %arg6: memref<128x256xf32, #tpu.memory_space<vmem>>, %arg7: memref<1x256xf32, #tpu.memory_space<vmem>>, %arg8: memref<256x256xf32, #tpu.memory_space<vmem>>, %arg9: memref<1x256xf32, #tpu.memory_space<vmem>>, %arg10: memref<256x128xf32, #tpu.memory_space<vmem>>, %arg11: memref<1x128xf32, #tpu.memory_space<vmem>>, %arg12: memref<8x128xf32, #tpu.memory_space<vmem>>) attributes {dimension_semantics = [#tpu.dimension_semantics<parallel>], iteration_bounds = array<i64: 1>, scalar_prefetch = 0 : i64, scratch_operands = 0 : i64, tpu.core_type = #tpu.core_type<tc>, window_params = [{transform_indices = @transform_0, window_bounds = array<i64: 8, 42>}, {pipeline_mode = #tpu.pipeline_mode<synchronous>, transform_indices = @transform_1, window_bounds = array<i64: 42, 128>}, {pipeline_mode = #tpu.pipeline_mode<synchronous>, transform_indices = @transform_2, window_bounds = array<i64: 1, 128>}, {pipeline_mode = #tpu.pipeline_mode<synchronous>, transform_indices = @transform_3, window_bounds = array<i64: 128, 128>}, {pipeline_mode = #tpu.pipeline_mode<synchronous>, transform_indices = @transform_4, window_bounds = array<i64: 1, 128>}, {pipeline_mode = #tpu.pipeline_mode<synchronous>, transform_indices = @transform_5, window_bounds = array<i64: 128, 256>}, {pipeline_mode = #tpu.pipeline_mode<synchronous>, transform_indices = @transform_6, window_bounds = array<i64: 1, 256>}, {pipeline_mode = #tpu.pipeline_mode<synchronous>, transform_indices = @transform_7, window_bounds = array<i64: 256, 256>}, {pipeline_mode = #tpu.pipeline_mode<synchronous>, transform_indices = @transform_8, window_bounds = array<i64: 1, 256>}, {pipeline_mode = #tpu.pipeline_mode<synchronous>, transform_indices = @transform_9, window_bounds = array<i64: 256, 128>}, {pipeline_mode = #tpu.pipeline_mode<synchronous>, transform_indices = @transform_10, window_bounds = array<i64: 1, 128>}, {transform_indices = @transform_11, window_bounds = array<i64: 8, 128>}]} {
    %c0 = arith.constant 0 : index
    %c0_0 = arith.constant 0 : index
    %0 = vector.load %arg1[%c0, %c0_0] : memref<8x42xf32, #tpu.memory_space<vmem>>, vector<8x42xf32>
    %c0_1 = arith.constant 0 : index
    %c0_2 = arith.constant 0 : index
    %1 = vector.load %arg2[%c0_1, %c0_2] : memref<42x128xf32, #tpu.memory_space<vmem>>, vector<42x128xf32>
    %cst = arith.constant dense<0.000000e+00> : vector<8x128xf32>
    %2 = tpu.matmul %0, %1, %cst {dimension_numbers = #tpu.dot_dimension_numbers<[1], [0], [0], [1], [0, 0, 1, 1], [], []>} : vector<8x42xf32>, vector<42x128xf32>, vector<8x128xf32> -> vector<8x128xf32>
    %c0_3 = arith.constant 0 : index
    %c0_4 = arith.constant 0 : index
    %3 = vector.load %arg3[%c0_3, %c0_4] : memref<1x128xf32, #tpu.memory_space<vmem>>, vector<1x128xf32>
    %4 = vector.broadcast %3 : vector<1x128xf32> to vector<8x128xf32>
    %5 = arith.addf %2, %4 : vector<8x128xf32>
    %cst_5 = arith.constant 0.00999999977 : f32
    %6 = vector.broadcast %cst_5 : f32 to vector<8x128xf32>
    %7 = arith.mulf %6, %5 : vector<8x128xf32>
    %8 = arith.maximumf %5, %7 : vector<8x128xf32>
    %c0_6 = arith.constant 0 : index
    %c0_7 = arith.constant 0 : index
    %9 = vector.load %arg4[%c0_6, %c0_7] : memref<128x128xf32, #tpu.memory_space<vmem>>, vector<128x128xf32>
    %cst_8 = arith.constant dense<0.000000e+00> : vector<8x128xf32>
    %10 = tpu.matmul %8, %9, %cst_8 {dimension_numbers = #tpu.dot_dimension_numbers<[1], [0], [0], [1], [0, 0, 1, 1], [], []>} : vector<8x128xf32>, vector<128x128xf32>, vector<8x128xf32> -> vector<8x128xf32>
    %c0_9 = arith.constant 0 : index
    %c0_10 = arith.constant 0 : index
    %11 = vector.load %arg5[%c0_9, %c0_10] : memref<1x128xf32, #tpu.memory_space<vmem>>, vector<1x128xf32>
    %12 = vector.broadcast %11 : vector<1x128xf32> to vector<8x128xf32>
    %13 = arith.addf %10, %12 : vector<8x128xf32>
    %cst_11 = arith.constant 0.00999999977 : f32
    %14 = vector.broadcast %cst_11 : f32 to vector<8x128xf32>
    %15 = arith.mulf %14, %13 : vector<8x128xf32>
    %16 = arith.maximumf %13, %15 : vector<8x128xf32>
    %c0_12 = arith.constant 0 : index
    %c0_13 = arith.constant 0 : index
    %17 = vector.load %arg6[%c0_12, %c0_13] : memref<128x256xf32, #tpu.memory_space<vmem>>, vector<128x256xf32>
    %cst_14 = arith.constant dense<0.000000e+00> : vector<8x256xf32>
    %18 = tpu.matmul %16, %17, %cst_14 {dimension_numbers = #tpu.dot_dimension_numbers<[1], [0], [0], [1], [0, 0, 1, 1], [], []>} : vector<8x128xf32>, vector<128x256xf32>, vector<8x256xf32> -> vector<8x256xf32>
    %c0_15 = arith.constant 0 : index
    %c0_16 = arith.constant 0 : index
    %19 = vector.load %arg7[%c0_15, %c0_16] : memref<1x256xf32, #tpu.memory_space<vmem>>, vector<1x256xf32>
    %20 = vector.broadcast %19 : vector<1x256xf32> to vector<8x256xf32>
    %21 = arith.addf %18, %20 : vector<8x256xf32>
    %cst_17 = arith.constant 0.000000e+00 : f32
    %22 = vector.broadcast %cst_17 : f32 to vector<8x256xf32>
    %23 = arith.maximumf %21, %22 : vector<8x256xf32>
    %c0_18 = arith.constant 0 : index
    %c0_19 = arith.constant 0 : index
    %24 = vector.load %arg8[%c0_18, %c0_19] : memref<256x256xf32, #tpu.memory_space<vmem>>, vector<256x256xf32>
    %cst_20 = arith.constant dense<0.000000e+00> : vector<8x256xf32>
    %25 = tpu.matmul %23, %24, %cst_20 {dimension_numbers = #tpu.dot_dimension_numbers<[1], [0], [0], [1], [0, 0, 1, 1], [], []>} : vector<8x256xf32>, vector<256x256xf32>, vector<8x256xf32> -> vector<8x256xf32>
    %c0_21 = arith.constant 0 : index
    %c0_22 = arith.constant 0 : index
    %26 = vector.load %arg9[%c0_21, %c0_22] : memref<1x256xf32, #tpu.memory_space<vmem>>, vector<1x256xf32>
    %27 = vector.broadcast %26 : vector<1x256xf32> to vector<8x256xf32>
    %28 = arith.addf %25, %27 : vector<8x256xf32>
    %cst_23 = arith.constant 0.000000e+00 : f32
    %29 = vector.broadcast %cst_23 : f32 to vector<8x256xf32>
    %30 = arith.maximumf %28, %29 : vector<8x256xf32>
    %c0_24 = arith.constant 0 : index
    %c0_25 = arith.constant 0 : index
    %31 = vector.load %arg10[%c0_24, %c0_25] : memref<256x128xf32, #tpu.memory_space<vmem>>, vector<256x128xf32>
    %cst_26 = arith.constant dense<0.000000e+00> : vector<8x128xf32>
    %32 = tpu.matmul %30, %31, %cst_26 {dimension_numbers = #tpu.dot_dimension_numbers<[1], [0], [0], [1], [0, 0, 1, 1], [], []>} : vector<8x256xf32>, vector<256x128xf32>, vector<8x128xf32> -> vector<8x128xf32>
    %c0_27 = arith.constant 0 : index
    %c0_28 = arith.constant 0 : index
    %33 = vector.load %arg11[%c0_27, %c0_28] : memref<1x128xf32, #tpu.memory_space<vmem>>, vector<1x128xf32>
    %34 = vector.broadcast %33 : vector<1x128xf32> to vector<8x128xf32>
    %35 = arith.addf %32, %34 : vector<8x128xf32>
    %c0_29 = arith.constant 0 : index
    %c0_30 = arith.constant 0 : index
    %36 = vector.load %arg12[%c0_29, %c0_30] : memref<8x128xf32, #tpu.memory_space<vmem>>, vector<8x128xf32>
    tpu.vector_store %arg12[%c0_29, %c0_30], %35 {strides = array<i32>} : memref<8x128xf32, #tpu.memory_space<vmem>>, vector<8x128xf32>,
    return
  }
  func.func @transform_0(%arg0: i32) -> (i32, i32) {
    %c0_i32 = arith.constant 0 : i32
    %c0_i32_0 = arith.constant 0 : i32
    return %arg0, %c0_i32 : i32, i32
  }
  func.func @transform_1(%arg0: i32) -> (i32, i32) {
    %c0_i32 = arith.constant 0 : i32
    %c0_i32_0 = arith.constant 0 : i32
    %c0_i32_1 = arith.constant 0 : i32
    return %c0_i32, %c0_i32_0 : i32, i32
  }
  func.func @transform_2(%arg0: i32) -> (i32, i32) {
    %c0_i32 = arith.constant 0 : i32
    %c0_i32_0 = arith.constant 0 : i32
    %c0_i32_1 = arith.constant 0 : i32
    return %c0_i32, %c0_i32_0 : i32, i32
  }
  func.func @transform_3(%arg0: i32) -> (i32, i32) {
    %c0_i32 = arith.constant 0 : i32
    %c0_i32_0 = arith.constant 0 : i32
    %c0_i32_1 = arith.constant 0 : i32
    return %c0_i32, %c0_i32_0 : i32, i32
  }
  func.func @transform_4(%arg0: i32) -> (i32, i32) {
    %c0_i32 = arith.constant 0 : i32
    %c0_i32_0 = arith.constant 0 : i32
    %c0_i32_1 = arith.constant 0 : i32
    return %c0_i32, %c0_i32_0 : i32, i32
  }
  func.func @transform_5(%arg0: i32) -> (i32, i32) {
    %c0_i32 = arith.constant 0 : i32
    %c0_i32_0 = arith.constant 0 : i32
    %c0_i32_1 = arith.constant 0 : i32
    return %c0_i32, %c0_i32_0 : i32, i32
  }
  func.func @transform_6(%arg0: i32) -> (i32, i32) {
    %c0_i32 = arith.constant 0 : i32
    %c0_i32_0 = arith.constant 0 : i32
    %c0_i32_1 = arith.constant 0 : i32
    return %c0_i32, %c0_i32_0 : i32, i32
  }
  func.func @transform_7(%arg0: i32) -> (i32, i32) {
    %c0_i32 = arith.constant 0 : i32
    %c0_i32_0 = arith.constant 0 : i32
    %c0_i32_1 = arith.constant 0 : i32
    return %c0_i32, %c0_i32_0 : i32, i32
  }
  func.func @transform_8(%arg0: i32) -> (i32, i32) {
    %c0_i32 = arith.constant 0 : i32
    %c0_i32_0 = arith.constant 0 : i32
    %c0_i32_1 = arith.constant 0 : i32
    return %c0_i32, %c0_i32_0 : i32, i32
  }
  func.func @transform_9(%arg0: i32) -> (i32, i32) {
    %c0_i32 = arith.constant 0 : i32
    %c0_i32_0 = arith.constant 0 : i32
    %c0_i32_1 = arith.constant 0 : i32
    return %c0_i32, %c0_i32_0 : i32, i32
  }
  func.func @transform_10(%arg0: i32) -> (i32, i32) {
    %c0_i32 = arith.constant 0 : i32
    %c0_i32_0 = arith.constant 0 : i32
    %c0_i32_1 = arith.constant 0 : i32
    return %c0_i32, %c0_i32_0 : i32, i32
  }
  func.func @transform_11(%arg0: i32) -> (i32, i32) {
    %c0_i32 = arith.constant 0 : i32
    %c0_i32_0 = arith.constant 0 : i32
    return %arg0, %c0_i32 : i32, i32
  }
}

</mosaic_0001>

<llo_original>
// kernel: simple_cnn_forward.1
$region0: #{simple_cnn_forward.1}
  #allocation0 [shape = 'u32[]', space=smem, size = 0x4, offset = 0x4, fixed_abs, tag = 'smem constant byte address 0x4 - core index']
  #allocation1 [shape = 'u32[72,128]{1,0:T(1,128)}', space=vmem, size = 0x9000, scoped, tag = 'internal scratch']
  %s0 = inlined_call_operand.vmem [shape: f32[8,42], index: 0, kind: input, shape index: {}]
  %s1 = inlined_call_operand.hbm [shape: f32[42,128], index: 1, kind: input, shape index: {}]
  %s2 = inlined_call_operand.vmem [shape: f32[1,128], index: 2, kind: input, shape index: {}]
  %s3 = inlined_call_operand.hbm [shape: f32[128,128], index: 3, kind: input, shape index: {}]
  %s4 = inlined_call_operand.vmem [shape: f32[1,128], index: 4, kind: input, shape index: {}]
  %s5 = inlined_call_operand.hbm [shape: f32[128,256], index: 5, kind: input, shape index: {}]
  %s6 = inlined_call_operand.vmem [shape: f32[1,256], index: 6, kind: input, shape index: {}]
  %s7 = inlined_call_operand.hbm [shape: f32[256,256], index: 7, kind: input, shape index: {}]
  %s8 = inlined_call_operand.vmem [shape: f32[1,256], index: 8, kind: input, shape index: {}]
  %s9 = inlined_call_operand.hbm [shape: f32[256,128], index: 9, kind: input, shape index: {}]
  %s10 = inlined_call_operand.vmem [shape: f32[1,128], index: 10, kind: input, shape index: {}]
  %s11 = inlined_call_operand.vmem [shape: f32[8,128], index: 11, kind: output, shape index: {}]
  %s12 = sld [smem:[#allocation0]]
  $region74: #{simple_cnn_forward.1} parent=0
    _
  %s14 = ssub.s32 1, %s12
  %s15 = scalar_select 0, %s14, %s12
  $region1: #{simple_cnn_forward.1} parent=0
    #allocation2 [shape = 'u8[24576]{0}', space=vmem, size = 0x6000, scoped, tag = 'input window, operand 1, single buffered']
    #allocation3 [shape = 's32[1]{0}', space=sflag, size = 0x4, scoped, tag = 'scoped memory for simple_cnn_forward.1']
    #allocation4 [shape = 'u8[65536]{0}', space=vmem, size = 0x10000, scoped, tag = 'input window, operand 3, single buffered']
    #allocation5 [shape = 's32[1]{0}', space=sflag, size = 0x4, scoped, tag = 'scoped memory for simple_cnn_forward.1']
    #allocation6 [shape = 'u8[131072]{0}', space=vmem, size = 0x20000, scoped, tag = 'input window, operand 5, single buffered']
    #allocation7 [shape = 'u8[262144]{0}', space=vmem, size = 0x40000, scoped, tag = 'input window, operand 7, single buffered']
    #allocation8 [shape = 's32[1]{0}', space=sflag, size = 0x4, scoped, tag = 'scoped memory for simple_cnn_forward.1']
    #allocation9 [shape = 'u8[131072]{0}', space=vmem, size = 0x20000, scoped, tag = 'input window, operand 9, single buffered']
    %16 = vsyncpa [#allocation3], 0
    %17 = vsyncpa [#allocation5], 0
    %18 = vsyncpa [#allocation8], 0
    // Predicated region
    $region2: #{simple_cnn_forward.1} parent=1 // pred_check
      _
    $region3: #{simple_cnn_forward.1} parent=1 // pred_check_branch
      %20 = sbr.rel (0) target = $region5
    $region4: #{simple_cnn_forward.1} parent=1 // pred_region
      _
    $region5: #{simple_cnn_forward.1} parent=1 // pred_fallthru
      _
    // Predicated region
    $region6: #{simple_cnn_forward.1} parent=1 // pred_check
      _
    $region7: #{simple_cnn_forward.1} parent=1 // pred_check_branch
      %22 = sbr.rel (0) target = $region9
    $region8: #{simple_cnn_forward.1} parent=1 // pred_region
      %24 = vsyncadd [#allocation3], 0
      %s25 = sshll.u32 %s1, 4
      %s26 = int_to_ptr.hbm [resolvable:$true] %s25
      %s27 = sshll.u32 [#allocation2], 4
      %s28 = int_to_ptr.vmem [resolvable:$true] %s27
      %33 = dma.hbm_to_vmem [thread:$0]  %s26, 768, %s28, [#allocation3], 128, 128, 8
    $region9: #{simple_cnn_forward.1} parent=1 // pred_fallthru
      _
    // Predicated region
    $region10: #{simple_cnn_forward.1} parent=1 // pred_check
      _
    $region11: #{simple_cnn_forward.1} parent=1 // pred_check_branch
      %35 = sbr.rel (0) target = $region13
    $region12: #{simple_cnn_forward.1} parent=1 // pred_region
      _
    $region13: #{simple_cnn_forward.1} parent=1 // pred_fallthru
      _
    // Predicated region
    $region14: #{simple_cnn_forward.1} parent=1 // pred_check
      _
    $region15: #{simple_cnn_forward.1} parent=1 // pred_check_branch
      %37 = sbr.rel (0) target = $region17
    $region16: #{simple_cnn_forward.1} parent=1 // pred_region
      %39 = vsyncadd [#allocation5], 0
      %s40 = sshll.u32 %s3, 4
      %s41 = int_to_ptr.hbm [resolvable:$true] %s40
      %s42 = sshll.u32 [#allocation4], 4
      %s43 = int_to_ptr.vmem [resolvable:$true] %s42
      %48 = dma.hbm_to_vmem [thread:$0]  %s41, 2048, %s43, [#allocation5], 128, 128, 8
    $region17: #{simple_cnn_forward.1} parent=1 // pred_fallthru
      _
    // Predicated region
    $region18: #{simple_cnn_forward.1} parent=1 // pred_check
      _
    $region19: #{simple_cnn_forward.1} parent=1 // pred_check_branch
      %50 = sbr.rel (0) target = $region21
    $region20: #{simple_cnn_forward.1} parent=1 // pred_region
      _
    $region21: #{simple_cnn_forward.1} parent=1 // pred_fallthru
      _
    // Predicated region
    $region22: #{simple_cnn_forward.1} parent=1 // pred_check
      _
    $region23: #{simple_cnn_forward.1} parent=1 // pred_check_branch
      %52 = sbr.rel (0) target = $region25
    $region24: #{simple_cnn_forward.1} parent=1 // pred_region
      %54 = vsyncadd [#allocation5], 0
      %s55 = sshll.u32 %s5, 4
      %s56 = int_to_ptr.hbm [resolvable:$true] %s55
      %s57 = sshll.u32 [#allocation6], 4
      %s58 = int_to_ptr.vmem [resolvable:$true] %s57
      %63 = dma.hbm_to_vmem [thread:$0]  %s56, 4096, %s58, [#allocation5], 256, 256, 16
    $region25: #{simple_cnn_forward.1} parent=1 // pred_fallthru
      _
    // Predicated region
    $region26: #{simple_cnn_forward.1} parent=1 // pred_check
      _
    $region27: #{simple_cnn_forward.1} parent=1 // pred_check_branch
      %65 = sbr.rel (0) target = $region29
    $region28: #{simple_cnn_forward.1} parent=1 // pred_region
      _
    $region29: #{simple_cnn_forward.1} parent=1 // pred_fallthru
      _
    // Predicated region
    $region30: #{simple_cnn_forward.1} parent=1 // pred_check
      _
    $region31: #{simple_cnn_forward.1} parent=1 // pred_check_branch
      %67 = sbr.rel (0) target = $region33
    $region32: #{simple_cnn_forward.1} parent=1 // pred_region
      %69 = vsyncadd [#allocation8], 0
      %s70 = sshll.u32 %s7, 4
      %s71 = int_to_ptr.hbm [resolvable:$true] %s70
      %s72 = sshll.u32 [#allocation7], 4
      %s73 = int_to_ptr.vmem [resolvable:$true] %s72
      %78 = dma.hbm_to_vmem [thread:$0]  %s71, 8192, %s73, [#allocation8], 256, 256, 16
    $region33: #{simple_cnn_forward.1} parent=1 // pred_fallthru
      _
    // Predicated region
    $region34: #{simple_cnn_forward.1} parent=1 // pred_check
      _
    $region35: #{simple_cnn_forward.1} parent=1 // pred_check_branch
      %80 = sbr.rel (0) target = $region37
    $region36: #{simple_cnn_forward.1} parent=1 // pred_region
      _
    $region37: #{simple_cnn_forward.1} parent=1 // pred_fallthru
      _
    // Predicated region
    $region38: #{simple_cnn_forward.1} parent=1 // pred_check
      _
    $region39: #{simple_cnn_forward.1} parent=1 // pred_check_branch
      %82 = sbr.rel (0) target = $region41
    $region40: #{simple_cnn_forward.1} parent=1 // pred_region
      %84 = vsyncadd [#allocation8], 0
      %s85 = sshll.u32 %s9, 4
      %s86 = int_to_ptr.hbm [resolvable:$true] %s85
      %s87 = sshll.u32 [#allocation9], 4
      %s88 = int_to_ptr.vmem [resolvable:$true] %s87
      %93 = dma.hbm_to_vmem [thread:$0]  %s86, 4096, %s88, [#allocation8], 128, 128, 8
    $region41: #{simple_cnn_forward.1} parent=1 // pred_fallthru
      _
    // Predicated region
    $region42: #{simple_cnn_forward.1} parent=1 // pred_check
      _
    $region43: #{simple_cnn_forward.1} parent=1 // pred_check_branch
      %95 = sbr.rel (0) target = $region45
    $region44: #{simple_cnn_forward.1} parent=1 // pred_region
      _
    $region45: #{simple_cnn_forward.1} parent=1 // pred_fallthru
      _
    // Predicated region
    $region46: #{simple_cnn_forward.1} parent=1 // pred_check
      _
    $region47: #{simple_cnn_forward.1} parent=1 // pred_check_branch
      %97 = sbr.rel (0) target = $region49
    $region48: #{simple_cnn_forward.1} parent=1 // pred_region
      %99 = dma.done [#allocation3], 768
    $region49: #{simple_cnn_forward.1} parent=1 // pred_fallthru
      _
    // Predicated region
    $region50: #{simple_cnn_forward.1} parent=1 // pred_check
      _
    $region51: #{simple_cnn_forward.1} parent=1 // pred_check_branch
      %101 = sbr.rel (0) target = $region53
    $region52: #{simple_cnn_forward.1} parent=1 // pred_region
      %103 = dma.done [#allocation5], 2048
    $region53: #{simple_cnn_forward.1} parent=1 // pred_fallthru
      _
    // Predicated region
    $region54: #{simple_cnn_forward.1} parent=1 // pred_check
      _
    $region55: #{simple_cnn_forward.1} parent=1 // pred_check_branch
      %105 = sbr.rel (0) target = $region57
    $region56: #{simple_cnn_forward.1} parent=1 // pred_region
      %107 = dma.done [#allocation5], 4096
    $region57: #{simple_cnn_forward.1} parent=1 // pred_fallthru
      _
    // Predicated region
    $region58: #{simple_cnn_forward.1} parent=1 // pred_check
      _
    $region59: #{simple_cnn_forward.1} parent=1 // pred_check_branch
      %109 = sbr.rel (0) target = $region61
    $region60: #{simple_cnn_forward.1} parent=1 // pred_region
      %111 = dma.done [#allocation8], 8192
    $region61: #{simple_cnn_forward.1} parent=1 // pred_fallthru
      _
    // Predicated region
    $region62: #{simple_cnn_forward.1} parent=1 // pred_check
      _
    $region63: #{simple_cnn_forward.1} parent=1 // pred_check_branch
      %113 = sbr.rel (0) target = $region65
    $region64: #{simple_cnn_forward.1} parent=1 // pred_region
      %115 = dma.done [#allocation8], 4096
    $region65: #{simple_cnn_forward.1} parent=1 // pred_fallthru
      _
    %v116 = vld [vmem:[%s0] sm:$0xff]
    %v117 = vld [vmem:[#allocation2] sm:$0xff]
    %v118 = vld [vmem:[#allocation2 + $0x8] sm:$0xff]
    %v119 = vld [vmem:[#allocation2 + $0x10] sm:$0xff]
    %v120 = vld [vmem:[#allocation2 + $0x18] sm:$0xff]
    %v121 = vld [vmem:[#allocation2 + $0x20] sm:$0xff]
    %v122 = vld [vmem:[#allocation2 + $0x28] sm:$0x3]
    %v123 = vld [vmem:[%s2] sm:$0x1]
    %v125 = vperm.slane %v123, 0
    %vm127 = vcmask 343040
    %v129 = vsel %vm127, %v116, 0
    %vm131 = vcmask 1041408
    %v133 = vsel %vm131, %v122, 0
    %135 = vmatpush.msra.mxu0 0.0
    %136 = vmatpush.msra.mxu0 0.0
    %137 = vmatpush.msra.mxu0 0.0
    %138 = vmatpush.msra.mxu0 0.0
    %139 = vmatpush.msra.mxu0 0.0
    %140 = vmatpush.msra.mxu0 0.0
    %141 = vmatpush.msra.mxu0 0.0
    %142 = vmatpush.msra.mxu0 0.0
    %143 = vmatpush.msra.mxu0 0.0
    %144 = vmatpush.msra.mxu0 0.0
    %145 = vmatpush.msra.mxu0 %v133
    %146 = vmatpush.msra.mxu0 %v121
    %147 = vmatpush.msra.mxu0 %v120
    %148 = vmatpush.msra.mxu0 %v119
    %149 = vmatpush.msra.mxu0 %v118
    %150 = vmatpush.msra.mxu0 %v117
    %151 = vmatmul.f32.gmra.mxu0 %v129
    %v152 = vpop.f32.mrf.mxu0
    %v153 = vadd.f32 %v125, %v152
    %154 = vdwg.mxu0
    %v155 = vmul.f32 %v153, 0.01
    %v156 = vmax.f32 %v153, %v155
    %v157 = vld [vmem:[#allocation4] sm:$0xff]
    %v158 = vld [vmem:[#allocation4 + $0x8] sm:$0xff]
    %v159 = vld [vmem:[#allocation4 + $0x10] sm:$0xff]
    %v160 = vld [vmem:[#allocation4 + $0x18] sm:$0xff]
    %v161 = vld [vmem:[#allocation4 + $0x20] sm:$0xff]
    %v162 = vld [vmem:[#allocation4 + $0x28] sm:$0xff]
    %v163 = vld [vmem:[#allocation4 + $0x30] sm:$0xff]
    %v164 = vld [vmem:[#allocation4 + $0x38] sm:$0xff]
    %v165 = vld [vmem:[#allocation4 + $0x40] sm:$0xff]
    %v166 = vld [vmem:[#allocation4 + $0x48] sm:$0xff]
    %v167 = vld [vmem:[#allocation4 + $0x50] sm:$0xff]
    %v168 = vld [vmem:[#allocation4 + $0x58] sm:$0xff]
    %v169 = vld [vmem:[#allocation4 + $0x60] sm:$0xff]
    %v170 = vld [vmem:[#allocation4 + $0x68] sm:$0xff]
    %v171 = vld [vmem:[#allocation4 + $0x70] sm:$0xff]
    %v172 = vld [vmem:[#allocation4 + $0x78] sm:$0xff]
    %v173 = vld [vmem:[%s4] sm:$0x1]
    %v175 = vperm.slane %v173, 0
    %177 = vmatpush.msra.mxu0 %v172
    %178 = vmatpush.msra.mxu0 %v171
    %179 = vmatpush.msra.mxu0 %v170
    %180 = vmatpush.msra.mxu0 %v169
    %181 = vmatpush.msra.mxu0 %v168
    %182 = vmatpush.msra.mxu0 %v167
    %183 = vmatpush.msra.mxu0 %v166
    %184 = vmatpush.msra.mxu0 %v165
    %185 = vmatpush.msra.mxu0 %v164
    %186 = vmatpush.msra.mxu0 %v163
    %187 = vmatpush.msra.mxu0 %v162
    %188 = vmatpush.msra.mxu0 %v161
    %189 = vmatpush.msra.mxu0 %v160
    %190 = vmatpush.msra.mxu0 %v159
    %191 = vmatpush.msra.mxu0 %v158
    %192 = vmatpush.msra.mxu0 %v157
    %193 = vmatmul.f32.gmra.mxu0 %v156
    %v194 = vpop.f32.mrf.mxu0
    %v195 = vadd.f32 %v175, %v194
    %196 = vdwg.mxu0
    %v197 = vmul.f32 %v195, 0.01
    %v198 = vmax.f32 %v195, %v197
    %v199 = vld [vmem:[#allocation6] sm:$0xff]
    %v200 = vld [vmem:[#allocation6 + $0x8] sm:$0xff]
    %v201 = vld [vmem:[#allocation6 + $0x10] sm:$0xff]
    %v202 = vld [vmem:[#allocation6 + $0x18] sm:$0xff]
    %v203 = vld [vmem:[#allocation6 + $0x20] sm:$0xff]
    %v204 = vld [vmem:[#allocation6 + $0x28] sm:$0xff]
    %v205 = vld [vmem:[#allocation6 + $0x30] sm:$0xff]
    %v206 = vld [vmem:[#allocation6 + $0x38] sm:$0xff]
    %v207 = vld [vmem:[#allocation6 + $0x40] sm:$0xff]
    %v208 = vld [vmem:[#allocation6 + $0x48] sm:$0xff]
    %v209 = vld [vmem:[#allocation6 + $0x50] sm:$0xff]
    %v210 = vld [vmem:[#allocation6 + $0x58] sm:$0xff]
    %v211 = vld [vmem:[#allocation6 + $0x60] sm:$0xff]
    %v212 = vld [vmem:[#allocation6 + $0x68] sm:$0xff]
    %v213 = vld [vmem:[#allocation6 + $0x70] sm:$0xff]
    %v214 = vld [vmem:[#allocation6 + $0x78] sm:$0xff]
    %v215 = vld [vmem:[#allocation6 + $0x80] sm:$0xff]
    %v216 = vld [vmem:[#allocation6 + $0x88] sm:$0xff]
    %v217 = vld [vmem:[#allocation6 + $0x90] sm:$0xff]
    %v218 = vld [vmem:[#allocation6 + $0x98] sm:$0xff]
    %v219 = vld [vmem:[#allocation6 + $0xa0] sm:$0xff]
    %v220 = vld [vmem:[#allocation6 + $0xa8] sm:$0xff]
    %v221 = vld [vmem:[#allocation6 + $0xb0] sm:$0xff]
    %v222 = vld [vmem:[#allocation6 + $0xb8] sm:$0xff]
    %v223 = vld [vmem:[#allocation6 + $0xc0] sm:$0xff]
    %v224 = vld [vmem:[#allocation6 + $0xc8] sm:$0xff]
    %v225 = vld [vmem:[#allocation6 + $0xd0] sm:$0xff]
    %v226 = vld [vmem:[#allocation6 + $0xd8] sm:$0xff]
    %v227 = vld [vmem:[#allocation6 + $0xe0] sm:$0xff]
    %v228 = vld [vmem:[#allocation6 + $0xe8] sm:$0xff]
    %v229 = vld [vmem:[#allocation6 + $0xf0] sm:$0xff]
    %v230 = vld [vmem:[#allocation6 + $0xf8] sm:$0xff]
    %v231 = vld [vmem:[%s6] sm:$0x3]
    %v233 = vperm.slane %v231, 0
    %v234 = vperm.slane %v231, 1
    %237 = vmatpush.msra.mxu0 %v229
    %238 = vmatpush.msra.mxu0 %v227
    %239 = vmatpush.msra.mxu0 %v225
    %240 = vmatpush.msra.mxu0 %v223
    %241 = vmatpush.msra.mxu0 %v221
    %242 = vmatpush.msra.mxu0 %v219
    %243 = vmatpush.msra.mxu0 %v217
    %244 = vmatpush.msra.mxu0 %v215
    %245 = vmatpush.msra.mxu0 %v213
    %246 = vmatpush.msra.mxu0 %v211
    %247 = vmatpush.msra.mxu0 %v209
    %248 = vmatpush.msra.mxu0 %v207
    %249 = vmatpush.msra.mxu0 %v205
    %250 = vmatpush.msra.mxu0 %v203
    %251 = vmatpush.msra.mxu0 %v201
    %252 = vmatpush.msra.mxu0 %v199
    %253 = vmatmul.f32.gmra.mxu0 %v198
    %v254 = vpop.f32.mrf.mxu0
    %v255 = vadd.f32 %v233, %v254
    %256 = vdwg.mxu0
    %257 = vmatpush.msra.mxu0 %v230
    %258 = vmatpush.msra.mxu0 %v228
    %259 = vmatpush.msra.mxu0 %v226
    %260 = vmatpush.msra.mxu0 %v224
    %261 = vmatpush.msra.mxu0 %v222
    %262 = vmatpush.msra.mxu0 %v220
    %263 = vmatpush.msra.mxu0 %v218
    %264 = vmatpush.msra.mxu0 %v216
    %265 = vmatpush.msra.mxu0 %v214
    %266 = vmatpush.msra.mxu0 %v212
    %267 = vmatpush.msra.mxu0 %v210
    %268 = vmatpush.msra.mxu0 %v208
    %269 = vmatpush.msra.mxu0 %v206
    %270 = vmatpush.msra.mxu0 %v204
    %271 = vmatpush.msra.mxu0 %v202
    %272 = vmatpush.msra.mxu0 %v200
    %273 = vmatmul.f32.gmra.mxu0 %v198
    %v274 = vpop.f32.mrf.mxu0
    %v275 = vadd.f32 %v234, %v274
    %276 = vdwg.mxu0
    %v277 = vmax.f32 %v255, 0.0
    %v278 = vmax.f32 %v275, 0.0
    %v279 = vld [vmem:[#allocation7] sm:$0xff]
    %v280 = vld [vmem:[#allocation7 + $0x8] sm:$0xff]
    %v281 = vld [vmem:[#allocation7 + $0x10] sm:$0xff]
    %v282 = vld [vmem:[#allocation7 + $0x18] sm:$0xff]
    %v283 = vld [vmem:[#allocation7 + $0x20] sm:$0xff]
    %v284 = vld [vmem:[#allocation7 + $0x28] sm:$0xff]
    %v285 = vld [vmem:[#allocation7 + $0x30] sm:$0xff]
    %v286 = vld [vmem:[#allocation7 + $0x38] sm:$0xff]
    %v287 = vld [vmem:[#allocation7 + $0x40] sm:$0xff]
    %v288 = vld [vmem:[#allocation7 + $0x48] sm:$0xff]
    %v289 = vld [vmem:[#allocation7 + $0x50] sm:$0xff]
    %v290 = vld [vmem:[#allocation7 + $0x58] sm:$0xff]
    %v291 = vld [vmem:[#allocation7 + $0x60] sm:$0xff]
    %v292 = vld [vmem:[#allocation7 + $0x68] sm:$0xff]
    %v293 = vld [vmem:[#allocation7 + $0x70] sm:$0xff]
    %v294 = vld [vmem:[#allocation7 + $0x78] sm:$0xff]
    %v295 = vld [vmem:[#allocation7 + $0x80] sm:$0xff]
    %v296 = vld [vmem:[#allocation7 + $0x88] sm:$0xff]
    %v297 = vld [vmem:[#allocation7 + $0x90] sm:$0xff]
    %v298 = vld [vmem:[#allocation7 + $0x98] sm:$0xff]
    %v299 = vld [vmem:[#allocation7 + $0xa0] sm:$0xff]
    %v300 = vld [vmem:[#allocation7 + $0xa8] sm:$0xff]
    %v301 = vld [vmem:[#allocation7 + $0xb0] sm:$0xff]
    %v302 = vld [vmem:[#allocation7 + $0xb8] sm:$0xff]
    %v303 = vld [vmem:[#allocation7 + $0xc0] sm:$0xff]
    %v304 = vld [vmem:[#allocation7 + $0xc8] sm:$0xff]
    %v305 = vld [vmem:[#allocation7 + $0xd0] sm:$0xff]
    %v306 = vld [vmem:[#allocation7 + $0xd8] sm:$0xff]
    %v307 = vld [vmem:[#allocation7 + $0xe0] sm:$0xff]
    %v308 = vld [vmem:[#allocation7 + $0xe8] sm:$0xff]
    %v309 = vld [vmem:[#allocation7 + $0xf0] sm:$0xff]
    %v310 = vld [vmem:[#allocation7 + $0xf8] sm:$0xff]
    %v311 = vld [vmem:[#allocation7 + $0x100] sm:$0xff]
    %v312 = vld [vmem:[#allocation7 + $0x108] sm:$0xff]
    %v313 = vld [vmem:[#allocation7 + $0x110] sm:$0xff]
    %v314 = vld [vmem:[#allocation7 + $0x118] sm:$0xff]
    %v315 = vld [vmem:[#allocation7 + $0x120] sm:$0xff]
    %v316 = vld [vmem:[#allocation7 + $0x128] sm:$0xff]
    %v317 = vld [vmem:[#allocation7 + $0x130] sm:$0xff]
    %v318 = vld [vmem:[#allocation7 + $0x138] sm:$0xff]
    %v319 = vld [vmem:[#allocation7 + $0x140] sm:$0xff]
    %v320 = vld [vmem:[#allocation7 + $0x148] sm:$0xff]
    %v321 = vld [vmem:[#allocation7 + $0x150] sm:$0xff]
    %v322 = vld [vmem:[#allocation7 + $0x158] sm:$0xff]
    %v323 = vld [vmem:[#allocation7 + $0x160] sm:$0xff]
    %v324 = vld [vmem:[#allocation7 + $0x168] sm:$0xff]
    %v325 = vld [vmem:[#allocation7 + $0x170] sm:$0xff]
    %v326 = vld [vmem:[#allocation7 + $0x178] sm:$0xff]
    %v327 = vld [vmem:[#allocation7 + $0x180] sm:$0xff]
    %v328 = vld [vmem:[#allocation7 + $0x188] sm:$0xff]
    %v329 = vld [vmem:[#allocation7 + $0x190] sm:$0xff]
    %v330 = vld [vmem:[#allocation7 + $0x198] sm:$0xff]
    %v331 = vld [vmem:[#allocation7 + $0x1a0] sm:$0xff]
    %v332 = vld [vmem:[#allocation7 + $0x1a8] sm:$0xff]
    %v333 = vld [vmem:[#allocation7 + $0x1b0] sm:$0xff]
    %v334 = vld [vmem:[#allocation7 + $0x1b8] sm:$0xff]
    %v335 = vld [vmem:[#allocation7 + $0x1c0] sm:$0xff]
    %v336 = vld [vmem:[#allocation7 + $0x1c8] sm:$0xff]
    %v337 = vld [vmem:[#allocation7 + $0x1d0] sm:$0xff]
    %v338 = vld [vmem:[#allocation7 + $0x1d8] sm:$0xff]
    %v339 = vld [vmem:[#allocation7 + $0x1e0] sm:$0xff]
    %v340 = vld [vmem:[#allocation7 + $0x1e8] sm:$0xff]
    %v341 = vld [vmem:[#allocation7 + $0x1f0] sm:$0xff]
    %v342 = vld [vmem:[#allocation7 + $0x1f8] sm:$0xff]
    %v343 = vld [vmem:[%s8] sm:$0x3]
    %v345 = vperm.slane %v343, 0
    %v346 = vperm.slane %v343, 1
    %349 = vmatpush.msra.mxu0 %v309
    %350 = vmatpush.msra.mxu0 %v307
    %351 = vmatpush.msra.mxu0 %v305
    %352 = vmatpush.msra.mxu0 %v303
    %353 = vmatpush.msra.mxu0 %v301
    %354 = vmatpush.msra.mxu0 %v299
    %355 = vmatpush.msra.mxu0 %v297
    %356 = vmatpush.msra.mxu0 %v295
    %357 = vmatpush.msra.mxu0 %v293
    %358 = vmatpush.msra.mxu0 %v291
    %359 = vmatpush.msra.mxu0 %v289
    %360 = vmatpush.msra.mxu0 %v287
    %361 = vmatpush.msra.mxu0 %v285
    %362 = vmatpush.msra.mxu0 %v283
    %363 = vmatpush.msra.mxu0 %v281
    %364 = vmatpush.msra.mxu0 %v279
    %365 = vmatmul.f32.gmra.mxu0 %v277
    %v366 = vpop.f32.mrf.mxu0
    %v367 = vadd.f32 %v345, %v366
    %368 = vdwg.mxu0
    %369 = vmatpush.msra.mxu0 %v341
    %370 = vmatpush.msra.mxu0 %v339
    %371 = vmatpush.msra.mxu0 %v337
    %372 = vmatpush.msra.mxu0 %v335
    %373 = vmatpush.msra.mxu0 %v333
    %374 = vmatpush.msra.mxu0 %v331
    %375 = vmatpush.msra.mxu0 %v329
    %376 = vmatpush.msra.mxu0 %v327
    %377 = vmatpush.msra.mxu0 %v325
    %378 = vmatpush.msra.mxu0 %v323
    %379 = vmatpush.msra.mxu0 %v321
    %380 = vmatpush.msra.mxu0 %v319
    %381 = vmatpush.msra.mxu0 %v317
    %382 = vmatpush.msra.mxu0 %v315
    %383 = vmatpush.msra.mxu0 %v313
    %384 = vmatpush.msra.mxu0 %v311
    %385 = vmatmul.f32.gmra.mxu0 %v278
    %v386 = vpop.f32.mrf.mxu0
    %v387 = vadd.f32 %v367, %v386
    %388 = vdwg.mxu0
    %389 = vmatpush.msra.mxu0 %v310
    %390 = vmatpush.msra.mxu0 %v308
    %391 = vmatpush.msra.mxu0 %v306
    %392 = vmatpush.msra.mxu0 %v304
    %393 = vmatpush.msra.mxu0 %v302
    %394 = vmatpush.msra.mxu0 %v300
    %395 = vmatpush.msra.mxu0 %v298
    %396 = vmatpush.msra.mxu0 %v296
    %397 = vmatpush.msra.mxu0 %v294
    %398 = vmatpush.msra.mxu0 %v292
    %399 = vmatpush.msra.mxu0 %v290
    %400 = vmatpush.msra.mxu0 %v288
    %401 = vmatpush.msra.mxu0 %v286
    %402 = vmatpush.msra.mxu0 %v284
    %403 = vmatpush.msra.mxu0 %v282
    %404 = vmatpush.msra.mxu0 %v280
    %405 = vmatmul.f32.gmra.mxu0 %v277
    %v406 = vpop.f32.mrf.mxu0
    %v407 = vadd.f32 %v346, %v406
    %408 = vdwg.mxu0
    %409 = vmatpush.msra.mxu0 %v342
    %410 = vmatpush.msra.mxu0 %v340
    %411 = vmatpush.msra.mxu0 %v338
    %412 = vmatpush.msra.mxu0 %v336
    %413 = vmatpush.msra.mxu0 %v334
    %414 = vmatpush.msra.mxu0 %v332
    %415 = vmatpush.msra.mxu0 %v330
    %416 = vmatpush.msra.mxu0 %v328
    %417 = vmatpush.msra.mxu0 %v326
    %418 = vmatpush.msra.mxu0 %v324
    %419 = vmatpush.msra.mxu0 %v322
    %420 = vmatpush.msra.mxu0 %v320
    %421 = vmatpush.msra.mxu0 %v318
    %422 = vmatpush.msra.mxu0 %v316
    %423 = vmatpush.msra.mxu0 %v314
    %424 = vmatpush.msra.mxu0 %v312
    %425 = vmatmul.f32.gmra.mxu0 %v278
    %v426 = vpop.f32.mrf.mxu0
    %v427 = vadd.f32 %v407, %v426
    %428 = vdwg.mxu0
    %v429 = vmax.f32 %v387, 0.0
    %v430 = vmax.f32 %v427, 0.0
    %v431 = vld [vmem:[#allocation9] sm:$0xff]
    %v432 = vld [vmem:[#allocation9 + $0x8] sm:$0xff]
    %v433 = vld [vmem:[#allocation9 + $0x10] sm:$0xff]
    %v434 = vld [vmem:[#allocation9 + $0x18] sm:$0xff]
    %v435 = vld [vmem:[#allocation9 + $0x20] sm:$0xff]
    %v436 = vld [vmem:[#allocation9 + $0x28] sm:$0xff]
    %v437 = vld [vmem:[#allocation9 + $0x30] sm:$0xff]
    %v438 = vld [vmem:[#allocation9 + $0x38] sm:$0xff]
    %v439 = vld [vmem:[#allocation9 + $0x40] sm:$0xff]
    %v440 = vld [vmem:[#allocation9 + $0x48] sm:$0xff]
    %v441 = vld [vmem:[#allocation9 + $0x50] sm:$0xff]
    %v442 = vld [vmem:[#allocation9 + $0x58] sm:$0xff]
    %v443 = vld [vmem:[#allocation9 + $0x60] sm:$0xff]
    %v444 = vld [vmem:[#allocation9 + $0x68] sm:$0xff]
    %v445 = vld [vmem:[#allocation9 + $0x70] sm:$0xff]
    %v446 = vld [vmem:[#allocation9 + $0x78] sm:$0xff]
    %v447 = vld [vmem:[#allocation9 + $0x80] sm:$0xff]
    %v448 = vld [vmem:[#allocation9 + $0x88] sm:$0xff]
    %v449 = vld [vmem:[#allocation9 + $0x90] sm:$0xff]
    %v450 = vld [vmem:[#allocation9 + $0x98] sm:$0xff]
    %v451 = vld [vmem:[#allocation9 + $0xa0] sm:$0xff]
    %v452 = vld [vmem:[#allocation9 + $0xa8] sm:$0xff]
    %v453 = vld [vmem:[#allocation9 + $0xb0] sm:$0xff]
    %v454 = vld [vmem:[#allocation9 + $0xb8] sm:$0xff]
    %v455 = vld [vmem:[#allocation9 + $0xc0] sm:$0xff]
    %v456 = vld [vmem:[#allocation9 + $0xc8] sm:$0xff]
    %v457 = vld [vmem:[#allocation9 + $0xd0] sm:$0xff]
    %v458 = vld [vmem:[#allocation9 + $0xd8] sm:$0xff]
    %v459 = vld [vmem:[#allocation9 + $0xe0] sm:$0xff]
    %v460 = vld [vmem:[#allocation9 + $0xe8] sm:$0xff]
    %v461 = vld [vmem:[#allocation9 + $0xf0] sm:$0xff]
    %v462 = vld [vmem:[#allocation9 + $0xf8] sm:$0xff]
    %v463 = vld [vmem:[%s10] sm:$0x1]
    %v465 = vperm.slane %v463, 0
    %467 = vmatpush.msra.mxu0 %v446
    %468 = vmatpush.msra.mxu0 %v445
    %469 = vmatpush.msra.mxu0 %v444
    %470 = vmatpush.msra.mxu0 %v443
    %471 = vmatpush.msra.mxu0 %v442
    %472 = vmatpush.msra.mxu0 %v441
    %473 = vmatpush.msra.mxu0 %v440
    %474 = vmatpush.msra.mxu0 %v439
    %475 = vmatpush.msra.mxu0 %v438
    %476 = vmatpush.msra.mxu0 %v437
    %477 = vmatpush.msra.mxu0 %v436
    %478 = vmatpush.msra.mxu0 %v435
    %479 = vmatpush.msra.mxu0 %v434
    %480 = vmatpush.msra.mxu0 %v433
    %481 = vmatpush.msra.mxu0 %v432
    %482 = vmatpush.msra.mxu0 %v431
    %483 = vmatmul.f32.gmra.mxu0 %v429
    %v484 = vpop.f32.mrf.mxu0
    %v485 = vadd.f32 %v465, %v484
    %486 = vdwg.mxu0
    %487 = vmatpush.msra.mxu0 %v462
    %488 = vmatpush.msra.mxu0 %v461
    %489 = vmatpush.msra.mxu0 %v460
    %490 = vmatpush.msra.mxu0 %v459
    %491 = vmatpush.msra.mxu0 %v458
    %492 = vmatpush.msra.mxu0 %v457
    %493 = vmatpush.msra.mxu0 %v456
    %494 = vmatpush.msra.mxu0 %v455
    %495 = vmatpush.msra.mxu0 %v454
    %496 = vmatpush.msra.mxu0 %v453
    %497 = vmatpush.msra.mxu0 %v452
    %498 = vmatpush.msra.mxu0 %v451
    %499 = vmatpush.msra.mxu0 %v450
    %500 = vmatpush.msra.mxu0 %v449
    %501 = vmatpush.msra.mxu0 %v448
    %502 = vmatpush.msra.mxu0 %v447
    %503 = vmatmul.f32.gmra.mxu0 %v430
    %v504 = vpop.f32.mrf.mxu0
    %v505 = vadd.f32 %v485, %v504
    %506 = vdwg.mxu0
    %507 = vst [vmem:[%s11] sm:$0xff] %v505
    // Predicated region
    $region66: #{simple_cnn_forward.1} parent=1 // pred_check
      _
    $region67: #{simple_cnn_forward.1} parent=1 // pred_check_branch
      %509 = sbr.rel (0) target = $region69
    $region68: #{simple_cnn_forward.1} parent=1 // pred_region
      _
    $region69: #{simple_cnn_forward.1} parent=1 // pred_fallthru
      _
    // Predicated region
    $region70: #{simple_cnn_forward.1} parent=1 // pred_check
      _
    $region71: #{simple_cnn_forward.1} parent=1 // pred_check_branch
      %511 = sbr.rel (0) target = $region73
    $region72: #{simple_cnn_forward.1} parent=1 // pred_region
      _
    $region73: #{simple_cnn_forward.1} parent=1 // pred_fallthru
      _
    %512 = vsyncpa [#allocation3], 1
    %513 = vsyncpa [#allocation5], 1
    %514 = vsyncpa [#allocation8], 1

</llo_original>
